<compile_context>
chip_gen: v7x
topology: tpu7x:2x2x1
jax: 0.10.0
libtpu: 0.0.40
codegen_flags: <defaults>
</compile_context>

<pallas_src>
import jax
import jax.numpy as jnp
from jax.experimental import pallas as pl
from jax.experimental.pallas import tpu as pltpu


_MAX_DMA_CHUNKS = 4  # HBM->HBM DMAs kept in flight inside the copy kernel


def _squeezed_shape(shape, dim):
    shape = tuple(int(s) for s in shape)
    if dim is None:
        return tuple(s for s in shape if s != 1)
    # TODO(synk): newer torch also accepts a tuple of dims; the module spec
    # types dim as Optional[int], so only int is handled here.
    ndim = max(len(shape), 1)
    if not (-ndim <= dim < ndim):
        raise IndexError(
            f"Dimension out of range (expected to be in range of "
            f"[{-ndim}, {ndim - 1}], but got {dim})")
    if len(shape) == 0:
        return shape
    d = dim + ndim if dim < 0 else dim
    if shape[d] != 1:
        return shape  # torch: squeeze(dim) is a no-op when that dim is not 1
    return shape[:d] + shape[d + 1:]


def _hbm_copy_kernel(x_hbm, o_hbm, sems):
    """Chunked HBM->HBM DMA copy: no VMEM staging, no grid, no vreg traffic."""
    rows = x_hbm.shape[0]
    n_chunks = sems.shape[0]
    base, rem = divmod(rows, n_chunks)
    copies = []
    start = 0
    for i in range(n_chunks):  # static Python loop: all offsets/sizes static
        size = base + (1 if i < rem else 0)
        cp = pltpu.make_async_copy(
            x_hbm.at[pl.ds(start, size)],
            o_hbm.at[pl.ds(start, size)],
            sems.at[i],
        )
        cp.start()
        copies.append(cp)
        start += size
    for cp in copies:  # all chunks were in flight; now drain
        cp.wait()


def _pallas_copy(x):
    """Materializing copy of `x` via direct HBM->HBM DMA."""
    n = int(x.size)
    itemsize = jnp.dtype(x.dtype).itemsize

    # Prefer a lane-dense 2D view (rows, C) with C a multiple of 128 so chunks
    # are whole contiguous rows; a ragged element count falls back to a flat
    # 1D view (HBM refs are linear, no (8,128) VMEM constraint applies).
    view_shape = (n,)
    for cand in (8192, 4096, 2048, 1024, 512, 256, 128):
        if n % cand == 0:
            view_shape = (n // cand, cand)
            break
    xv = jnp.reshape(x, view_shape)  # metadata-only (contiguous)

    # Multiple DMAs in flight only when the view has rows to split; ragged 1D
    # views (small/rare) use a single DMA.
    n_chunks = 1 if len(view_shape) == 1 else int(min(_MAX_DMA_CHUNKS, view_shape[0]))

    yv = pl.pallas_call(
        _hbm_copy_kernel,
        out_shape=jax.ShapeDtypeStruct(view_shape, x.dtype),
        in_specs=[pl.BlockSpec(memory_space=pl.ANY)],
        out_specs=pl.BlockSpec(memory_space=pl.ANY),
        scratch_shapes=[pltpu.SemaphoreType.DMA((n_chunks,))],
        cost_estimate=pl.CostEstimate(
            flops=0, transcendentals=0, bytes_accessed=2 * n * itemsize),
    )(xv)
    return yv


def pallas_squeeze(x, dim=None, *, materialize=False):
    out_shape = _squeezed_shape(x.shape, dim)
    if out_shape == tuple(x.shape):
        return x  # nothing to squeeze -> same tensor (torch semantics)
    if not materialize or int(x.size) == 0:
        # Fast path (default): squeeze preserves row-major order, so this is a
        # metadata-only bitcast in XLA -- zero HBM traffic, zero launch cost.
        return jnp.reshape(x, out_shape)
    # Forced materializing path: pure HBM->HBM DMA copy + free metadata reshape.
    return jnp.reshape(_pallas_copy(x), out_shape)


class Squeeze:
    """JAX/Pallas port of torchoutil.nn.Squeeze(dim, inplace)."""

    def __init__(self, dim=None, inplace: bool = True, materialize: bool = False) -> None:
        self.dim = dim
        # TODO(synk): `inplace` (torch .squeeze_()) has no JAX equivalent since
        # arrays are immutable; the returned value is identical either way.
        self.inplace = inplace
        self.materialize = materialize  # debug flag: force the Pallas DMA copy

    def __call__(self, x):
        return pallas_squeeze(x, self.dim, materialize=self.materialize)


if __name__ == "__main__":
    key = jax.random.PRNGKey(0)
    x = jax.random.normal(key, (2, 1, 16, 1, 16), dtype=jnp.float32)

    # --- default (metadata-only, fastest) path ---
    y = jax.block_until_ready(Squeeze()(x))
    ref = jnp.squeeze(x)
    assert y.shape == ref.shape and y.dtype == ref.dtype
    assert bool(jnp.array_equal(y, ref))

    y1 = jax.block_until_ready(Squeeze(dim=1)(x))
    assert y1.shape == (2, 16, 1, 16)
    assert bool(jnp.array_equal(y1, jnp.squeeze(x, axis=1)))

    y2 = jax.block_until_ready(Squeeze(dim=-2)(x))
    assert bool(jnp.array_equal(y2, jnp.squeeze(x, axis=-2)))

    y3 = jax.block_until_ready(Squeeze(dim=2, inplace=False)(x))
    assert y3.shape == x.shape and bool(jnp.array_equal(y3, x))

    # out-of-range dim raises, like torch
    try:
        Squeeze(dim=7)(x)
        raise AssertionError("expected IndexError for out-of-range dim")
    except IndexError:
        pass

    # --- Pallas HBM->HBM DMA copy path (materialize=True) ---
    yk = jax.block_until_ready(Squeeze(materialize=True)(x))
    assert yk.shape == (2, 16, 16)
    assert bool(jnp.array_equal(yk, jnp.squeeze(x)))

    # ragged element count -> flat 1D single-DMA path
    xr = jax.random.normal(jax.random.PRNGKey(2), (3, 1, 5, 7), dtype=jnp.float32)
    yr = jax.block_until_ready(pallas_squeeze(xr, 1, materialize=True))
    assert yr.shape == (3, 5, 7)
    assert bool(jnp.array_equal(yr, jnp.squeeze(xr, axis=1)))

    # lane-dense 2D view with multiple DMA chunks in flight
    xb = jax.random.normal(jax.random.PRNGKey(1), (4, 1, 256, 1024), dtype=jnp.float32)
    yb = jax.block_until_ready(pallas_squeeze(xb, None, materialize=True))
    assert yb.shape == (4, 256, 1024)
    assert bool(jnp.array_equal(yb, jnp.squeeze(xb)))

    print("KERNEL_OK")
</pallas_src>

<mosaic_0001>
module attributes {stable_mosaic.version = 11 : i64} {
  func.func @_hbm_copy_kernel(%arg0: memref<1x512xf32, #tpu.memory_space<any>>, %arg1: memref<1x512xf32, #tpu.memory_space<any>>, %arg2: memref<1x!tpu.dma_semaphore, #tpu.memory_space<semaphore_mem>>) attributes {dimension_semantics = [], scalar_prefetch = 0 : i64, scratch_operands = 1 : i64, tpu.core_type = #tpu.core_type<tc>} {
    %c0_i32 = arith.constant 0 : i32
    %c0_i32_0 = arith.constant 0 : i32
    %c0_i32_1 = arith.constant 0 : i32
    %0 = tpu.memref_slice %arg0[%c0_i32_0, %c0_i32_1] : memref<1x512xf32, #tpu.memory_space<any>> -> memref<1x512xf32, #tpu.memory_space<any>>
    %c0_i32_2 = arith.constant 0 : i32
    %c0_i32_3 = arith.constant 0 : i32
    %1 = tpu.memref_slice %arg1[%c0_i32_2, %c0_i32_3] : memref<1x512xf32, #tpu.memory_space<any>> -> memref<1x512xf32, #tpu.memory_space<any>>
    %2 = tpu.memref_slice %arg2[%c0_i32] : memref<1x!tpu.dma_semaphore, #tpu.memory_space<semaphore_mem>> -> memref<1x!tpu.dma_semaphore, #tpu.memory_space<semaphore_mem>>
    %3 = tpu.memref_squeeze %2 : memref<1x!tpu.dma_semaphore, #tpu.memory_space<semaphore_mem>> -> memref<!tpu.dma_semaphore, #tpu.memory_space<semaphore_mem>>
    tpu.enqueue_dma source(%0 : memref<1x512xf32, #tpu.memory_space<any>>) target(%1 : memref<1x512xf32, #tpu.memory_space<any>>) target_semaphore(%3 : memref<!tpu.dma_semaphore, #tpu.memory_space<semaphore_mem>>)
    %c0_i32_4 = arith.constant 0 : i32
    %c0_i32_5 = arith.constant 0 : i32
    %c0_i32_6 = arith.constant 0 : i32
    %4 = tpu.memref_slice %arg0[%c0_i32_5, %c0_i32_6] : memref<1x512xf32, #tpu.memory_space<any>> -> memref<1x512xf32, #tpu.memory_space<any>>
    %c0_i32_7 = arith.constant 0 : i32
    %c0_i32_8 = arith.constant 0 : i32
    %5 = tpu.memref_slice %arg1[%c0_i32_7, %c0_i32_8] : memref<1x512xf32, #tpu.memory_space<any>> -> memref<1x512xf32, #tpu.memory_space<any>>
    %6 = tpu.memref_slice %arg2[%c0_i32_4] : memref<1x!tpu.dma_semaphore, #tpu.memory_space<semaphore_mem>> -> memref<1x!tpu.dma_semaphore, #tpu.memory_space<semaphore_mem>>
    %7 = tpu.memref_squeeze %6 : memref<1x!tpu.dma_semaphore, #tpu.memory_space<semaphore_mem>> -> memref<!tpu.dma_semaphore, #tpu.memory_space<semaphore_mem>>
    tpu.wait_dma2 semaphore(%7 : memref<!tpu.dma_semaphore, #tpu.memory_space<semaphore_mem>>) src(%4 : memref<1x512xf32, #tpu.memory_space<any>>) dst(%5 : memref<1x512xf32, #tpu.memory_space<any>>)
    return
  }
}

</mosaic_0001>

<llo_original>
// kernel: tpu_custom_call.1
$region0: #{tpu_custom_call.1}
  #allocation0 [shape = 'u32[]', space=smem, size = 0x4, offset = 0x4, fixed_abs, tag = 'smem constant byte address 0x4 - core index']
  #allocation1 [shape = 'u32[144,128]{1,0:T(1,128)}', space=vmem, size = 0x12000, scoped, tag = 'internal scratch']
  #allocation2 [shape = 's32[1]{0}', space=sflag, size = 0x4, scoped, tag = 'scratch operand']
  #allocation3 [shape = 's32[]', space=sflag, size = 0x4, offset = 0, fixed_abs, tag = 'sflag constant byte address 0x0 - dummy sync flag']
  #allocation4 [shape = 'u32[0]{0}', space=smem, size = 0, offset = 0, fixed_abs, tag = 'smem constant byte address 0x0 - null']
  %s0 = inlined_call_operand.hbm [shape: f32[1,512], index: 0, kind: input, shape index: {}]
  %s1 = inlined_call_operand.hbm [shape: f32[1,512], index: 1, kind: output, shape index: {}]
  %s2 = sld [smem:[#allocation0]]
  $region2: #{tpu_custom_call.1} parent=0
    _
  %s4 = ssub.s32 1, %s2
  %s5 = scalar_select 0, %s4, %s2
  %s7 = sshll.u32 1, 14
  %s8 = sxor.u32 4294967295, %s7
  %s11 = sshll.u32 3, 24
  %s12 = sxor.u32 4294967295, %s11
  %s13 = sand.u32 0, %s12
  %s15 = sor.u32 %s13, 0
  %18 = dma.general %s0, 64, %s1, [#allocation2], [#allocation3], [#allocation4], %s15, 0
  %s19 = smul.u32 1, 4
  %s20 = sshll.u32 %s19, 4
  %21 = dma.done [#allocation2], %s20
  %22 = vsyncmov [#allocation2]
  %s23 = vpop.sfrf %22
  %p24 = scmp.eq.s32.totalorder %s23, 0
  %p25 = pneg %p24
  %27 = shalt.err (%p25)

</llo_original>
